<compile_context>
chip_gen: v5e
topology: v5e:2x2
jax: 0.10.0
libtpu: 0.0.40
codegen_flags: <defaults>
</compile_context>

<pallas_src>
import math

import jax
import jax.numpy as jnp
from jax.experimental import pallas as pl
from jax.experimental.pallas import tpu as pltpu

NCLS_PAD = 128  # lane-dense logits width; real classes are sliced out in the wrapper


def model_forward(x, wconv, bconv, whead, bhead):
    """x: (B, C, H, W) NCHW float32. Params follow PyTorch shapes:
       wconv (Cout, Cin, KH, KW), bconv (Cout,), whead (NCLS, Cout), bhead (NCLS,)."""
    B, C, H, W = x.shape
    Cout, _, KH, KW = wconv.shape
    NCLS = whead.shape[0]
    OH, OW = H - KH + 1, W - KW + 1            # 'VALID' conv, stride 1 (PyTorch default)
    P = OH * OW                                # number of conv output positions
    CK = KH * KW * C                           # folded contraction dim (27)

    # Batch tiling: keep >=2 parallel grid steps so both v7x TensorCores get work;
    # each step processes BB images with a statically unrolled loop.
    steps = 2 if B >= 2 else 1
    BB = math.ceil(B / steps)
    B_pad = steps * BB

    # --- cheap wrapper glue (tiny arrays only) ------------------------------
    # im2col: patches[b, p, (kh*KW + kw)*C + c] = x[b, c, oh+kh, ow+kw], p = oh*OW + ow.
    x_nhwc = jnp.transpose(x, (0, 2, 3, 1)).astype(jnp.float32)          # (B, H, W, C)
    taps = [x_nhwc[:, kh:kh + OH, kw:kw + OW, :]                         # (B, OH, OW, C)
            for kh in range(KH) for kw in range(KW)]
    patches = jnp.stack(taps, axis=3).reshape(B, P, CK)                  # (B, P, CK)
    if B_pad > B:
        patches = jnp.pad(patches, ((0, B_pad - B), (0, 0), (0, 0)))
    patches = patches.astype(jnp.bfloat16)                               # bf16 MXU operand

    # Conv weights flattened to match the (kh, kw, c) patch ordering.
    wtaps = (jnp.transpose(wconv, (2, 3, 1, 0))                          # (KH, KW, C, Cout)
             .reshape(CK, Cout).astype(jnp.bfloat16))
    bconv_row = bconv.reshape(1, Cout).astype(jnp.float32)

    # Pooling as a ones-row matmul; the 1/P mean scale is folded into the head
    # weights (pooling and the head are both linear).  Head padded lane-dense.
    pool_row = jnp.ones((1, P), jnp.bfloat16)
    whead_scaled = (whead.T.astype(jnp.float32) / float(P))              # (Cout, NCLS)
    whead_pad = jnp.zeros((Cout, NCLS_PAD), jnp.float32).at[:, :NCLS].set(whead_scaled)
    bhead_pad = jnp.zeros((1, NCLS_PAD), jnp.float32).at[:, :NCLS].set(
        bhead.astype(jnp.float32))

    def kernel(patch_ref, wtaps_ref, bconv_ref, pool_ref, whead_ref, bhead_ref, out_ref):
        # Statically unrolled over the BB images of this grid step.
        for b in range(BB):
            # Conv2d as ONE MXU dot over the folded K=27 contraction (f32 acc).
            conv = jnp.dot(patch_ref[b], wtaps_ref[...],
                           preferred_element_type=jnp.float32)           # (P, Cout)
            act = jnp.maximum(conv + bconv_ref[...], 0.0)                # bias + ReLU, f32
            # AdaptiveAvgPool2d((1,1)) + Flatten: ones-row matmul (scale folded in head).
            psum = jnp.dot(pool_ref[...], act.astype(jnp.bfloat16),
                           preferred_element_type=jnp.float32)           # (1, Cout)
            # Linear head (tiny; kept f32) onto lane-dense 128-wide logits row.
            logits = jnp.dot(psum, whead_ref[...],
                             preferred_element_type=jnp.float32) + bhead_ref[...]
            out_ref[b] = logits.astype(out_ref.dtype)                    # (1, NCLS_PAD)

    out = pl.pallas_call(
        kernel,
        out_shape=jax.ShapeDtypeStruct((B_pad, 1, NCLS_PAD), jnp.float32),
        grid=(steps,),
        in_specs=[
            pl.BlockSpec((BB, P, CK), lambda s: (s, 0, 0)),      # per-step im2col patches
            pl.BlockSpec((CK, Cout), lambda s: (0, 0)),          # folded conv weights
            pl.BlockSpec((1, Cout), lambda s: (0, 0)),           # conv bias
            pl.BlockSpec((1, P), lambda s: (0, 0)),              # pooling ones-row
            pl.BlockSpec((Cout, NCLS_PAD), lambda s: (0, 0)),    # head weights (/P, padded)
            pl.BlockSpec((1, NCLS_PAD), lambda s: (0, 0)),       # head bias (padded)
        ],
        out_specs=pl.BlockSpec((BB, 1, NCLS_PAD), lambda s: (s, 0, 0)),
        compiler_params=pltpu.CompilerParams(
            dimension_semantics=("parallel",),   # shard batch steps across TCs (v7x megacore)
        ),
    )(patches, wtaps, bconv_row, pool_row, whead_pad, bhead_pad)

    return out.reshape(B_pad, NCLS_PAD)[:B, :NCLS]


def _reference(x, wconv, bconv, whead, bhead):
    conv = jax.lax.conv_general_dilated(
        x, wconv, window_strides=(1, 1), padding="VALID",
        dimension_numbers=("NCHW", "OIHW", "NCHW"))
    conv = conv + bconv.reshape(1, -1, 1, 1)
    relu = jnp.maximum(conv, 0.0)
    pooled = jnp.mean(relu, axis=(2, 3))            # AdaptiveAvgPool2d((1,1)) + Flatten
    return pooled @ whead.T + bhead


if __name__ == "__main__":
    key = jax.random.PRNGKey(0)
    kx, kw1, kb1, kw2, kb2 = jax.random.split(key, 5)

    B, C, H, W = 2, 3, 16, 16
    Cout, NCLS, K = 64, 10, 3

    x = jax.random.normal(kx, (B, C, H, W), jnp.float32)
    # Deterministic synthetic params matching nn.Conv2d(3,64,3) / nn.Linear(64,10) shapes.
    wconv = jax.random.normal(kw1, (Cout, C, K, K), jnp.float32) * 0.1
    bconv = jax.random.normal(kb1, (Cout,), jnp.float32) * 0.1
    whead = jax.random.normal(kw2, (NCLS, Cout), jnp.float32) * 0.1
    bhead = jax.random.normal(kb2, (NCLS,), jnp.float32) * 0.1

    fwd = jax.jit(model_forward)
    out = jax.block_until_ready(fwd(x, wconv, bconv, whead, bhead))
    ref = _reference(x, wconv, bconv, whead, bhead)

    assert out.shape == (B, NCLS), out.shape
    # bf16 MXU operands with f32 accumulation -> slightly relaxed tolerance.
    assert jnp.allclose(out, ref, atol=5e-3, rtol=5e-3), (out, ref)
    print("KERNEL_OK")
</pallas_src>

<mosaic_0001>
module attributes {stable_mosaic.version = 11 : i64} {
  func.func @kernel(%arg0: i32, %arg1: memref<1x196x27xbf16, #tpu.memory_space<vmem>>, %arg2: memref<27x64xbf16, #tpu.memory_space<vmem>>, %arg3: memref<1x64xf32, #tpu.memory_space<vmem>>, %arg4: memref<1x196xbf16, #tpu.memory_space<vmem>>, %arg5: memref<64x128xf32, #tpu.memory_space<vmem>>, %arg6: memref<1x128xf32, #tpu.memory_space<vmem>>, %arg7: memref<1x1x128xf32, #tpu.memory_space<vmem>>) attributes {dimension_semantics = [#tpu.dimension_semantics<parallel>], iteration_bounds = array<i64: 2>, scalar_prefetch = 0 : i64, scratch_operands = 0 : i64, tpu.core_type = #tpu.core_type<tc>, window_params = [{transform_indices = @transform_0, window_bounds = array<i64: 1, 196, 27>}, {pipeline_mode = #tpu.pipeline_mode<synchronous>, transform_indices = @transform_1, window_bounds = array<i64: 27, 64>}, {pipeline_mode = #tpu.pipeline_mode<synchronous>, transform_indices = @transform_2, window_bounds = array<i64: 1, 64>}, {pipeline_mode = #tpu.pipeline_mode<synchronous>, transform_indices = @transform_3, window_bounds = array<i64: 1, 196>}, {pipeline_mode = #tpu.pipeline_mode<synchronous>, transform_indices = @transform_4, window_bounds = array<i64: 64, 128>}, {pipeline_mode = #tpu.pipeline_mode<synchronous>, transform_indices = @transform_5, window_bounds = array<i64: 1, 128>}, {transform_indices = @transform_6, window_bounds = array<i64: 1, 1, 128>}]} {
    %c0 = arith.constant 0 : index
    %c0_0 = arith.constant 0 : index
    %c0_1 = arith.constant 0 : index
    %0 = vector.load %arg1[%c0, %c0_0, %c0_1] : memref<1x196x27xbf16, #tpu.memory_space<vmem>>, vector<1x196x27xbf16>
    %1 = vector.shape_cast %0 : vector<1x196x27xbf16> to vector<196x27xbf16>
    %c0_2 = arith.constant 0 : index
    %c0_3 = arith.constant 0 : index
    %2 = vector.load %arg2[%c0_2, %c0_3] : memref<27x64xbf16, #tpu.memory_space<vmem>>, vector<27x64xbf16>
    %cst = arith.constant dense<0.000000e+00> : vector<196x64xf32>
    %3 = tpu.matmul %1, %2, %cst {dimension_numbers = #tpu.dot_dimension_numbers<[1], [0], [0], [1], [0, 0, 1, 1], [], []>} : vector<196x27xbf16>, vector<27x64xbf16>, vector<196x64xf32> -> vector<196x64xf32>
    %c0_4 = arith.constant 0 : index
    %c0_5 = arith.constant 0 : index
    %4 = vector.load %arg3[%c0_4, %c0_5] : memref<1x64xf32, #tpu.memory_space<vmem>>, vector<1x64xf32>
    %5 = vector.broadcast %4 : vector<1x64xf32> to vector<196x64xf32>
    %6 = arith.addf %3, %5 : vector<196x64xf32>
    %cst_6 = arith.constant 0.000000e+00 : f32
    %7 = vector.broadcast %cst_6 : f32 to vector<196x64xf32>
    %8 = arith.maximumf %6, %7 : vector<196x64xf32>
    %c0_7 = arith.constant 0 : index
    %c0_8 = arith.constant 0 : index
    %9 = vector.load %arg4[%c0_7, %c0_8] : memref<1x196xbf16, #tpu.memory_space<vmem>>, vector<1x196xbf16>
    %10 = arith.truncf %8 : vector<196x64xf32> to vector<196x64xbf16>
    %cst_9 = arith.constant dense<0.000000e+00> : vector<1x64xf32>
    %11 = tpu.matmul %9, %10, %cst_9 {dimension_numbers = #tpu.dot_dimension_numbers<[1], [0], [0], [1], [0, 0, 1, 1], [], []>} : vector<1x196xbf16>, vector<196x64xbf16>, vector<1x64xf32> -> vector<1x64xf32>
    %c0_10 = arith.constant 0 : index
    %c0_11 = arith.constant 0 : index
    %12 = vector.load %arg5[%c0_10, %c0_11] : memref<64x128xf32, #tpu.memory_space<vmem>>, vector<64x128xf32>
    %cst_12 = arith.constant dense<0.000000e+00> : vector<1x128xf32>
    %13 = tpu.matmul %11, %12, %cst_12 {dimension_numbers = #tpu.dot_dimension_numbers<[1], [0], [0], [1], [0, 0, 1, 1], [], []>} : vector<1x64xf32>, vector<64x128xf32>, vector<1x128xf32> -> vector<1x128xf32>
    %c0_13 = arith.constant 0 : index
    %c0_14 = arith.constant 0 : index
    %14 = vector.load %arg6[%c0_13, %c0_14] : memref<1x128xf32, #tpu.memory_space<vmem>>, vector<1x128xf32>
    %15 = arith.addf %13, %14 : vector<1x128xf32>
    %c0_15 = arith.constant 0 : index
    %c0_16 = arith.constant 0 : index
    %c0_17 = arith.constant 0 : index
    %16 = vector.load %arg7[%c0_15, %c0_16, %c0_17] : memref<1x1x128xf32, #tpu.memory_space<vmem>>, vector<1x1x128xf32>
    %17 = vector.shape_cast %16 : vector<1x1x128xf32> to vector<1x128xf32>
    %18 = vector.shape_cast %15 : vector<1x128xf32> to vector<1x1x128xf32>
    tpu.vector_store %arg7[%c0_15, %c0_16, %c0_17], %18 {strides = array<i32>} : memref<1x1x128xf32, #tpu.memory_space<vmem>>, vector<1x1x128xf32>,
    return
  }
  func.func @transform_0(%arg0: i32) -> (i32, i32, i32) {
    %c0_i32 = arith.constant 0 : i32
    %c0_i32_0 = arith.constant 0 : i32
    %c0_i32_1 = arith.constant 0 : i32
    return %arg0, %c0_i32, %c0_i32_0 : i32, i32, i32
  }
  func.func @transform_1(%arg0: i32) -> (i32, i32) {
    %c0_i32 = arith.constant 0 : i32
    %c0_i32_0 = arith.constant 0 : i32
    %c0_i32_1 = arith.constant 0 : i32
    return %c0_i32, %c0_i32_0 : i32, i32
  }
  func.func @transform_2(%arg0: i32) -> (i32, i32) {
    %c0_i32 = arith.constant 0 : i32
    %c0_i32_0 = arith.constant 0 : i32
    %c0_i32_1 = arith.constant 0 : i32
    return %c0_i32, %c0_i32_0 : i32, i32
  }
  func.func @transform_3(%arg0: i32) -> (i32, i32) {
    %c0_i32 = arith.constant 0 : i32
    %c0_i32_0 = arith.constant 0 : i32
    %c0_i32_1 = arith.constant 0 : i32
    return %c0_i32, %c0_i32_0 : i32, i32
  }
  func.func @transform_4(%arg0: i32) -> (i32, i32) {
    %c0_i32 = arith.constant 0 : i32
    %c0_i32_0 = arith.constant 0 : i32
    %c0_i32_1 = arith.constant 0 : i32
    return %c0_i32, %c0_i32_0 : i32, i32
  }
  func.func @transform_5(%arg0: i32) -> (i32, i32) {
    %c0_i32 = arith.constant 0 : i32
    %c0_i32_0 = arith.constant 0 : i32
    %c0_i32_1 = arith.constant 0 : i32
    return %c0_i32, %c0_i32_0 : i32, i32
  }
  func.func @transform_6(%arg0: i32) -> (i32, i32, i32) {
    %c0_i32 = arith.constant 0 : i32
    %c0_i32_0 = arith.constant 0 : i32
    %c0_i32_1 = arith.constant 0 : i32
    return %arg0, %c0_i32, %c0_i32_0 : i32, i32, i32
  }
}

</mosaic_0001>

<llo_original>
// kernel: model_forward.1
$region0: #{model_forward.1}
  #allocation0 [shape = 'u32[]', space=smem, size = 0x4, offset = 0x4, fixed_abs, tag = 'smem constant byte address 0x4 - core index']
  #allocation1 [shape = 'u32[72,128]{1,0:T(1,128)}', space=vmem, size = 0x9000, scoped, tag = 'internal scratch']
  %s0 = inlined_call_operand.vmem [shape: bf16[2,196,27], index: 0, kind: input, shape index: {}]
  %s1 = inlined_call_operand.vmem [shape: bf16[27,64], index: 1, kind: input, shape index: {}]
  %s2 = inlined_call_operand.vmem [shape: f32[1,64], index: 2, kind: input, shape index: {}]
  %s3 = inlined_call_operand.vmem [shape: bf16[1,196], index: 3, kind: input, shape index: {}]
  %s4 = inlined_call_operand.vmem [shape: f32[64,128], index: 4, kind: input, shape index: {}]
  %s5 = inlined_call_operand.vmem [shape: f32[1,128], index: 5, kind: input, shape index: {}]
  %s6 = inlined_call_operand.hbm [shape: f32[2,1,128], index: 6, kind: output, shape index: {}]
  %s7 = sld [smem:[#allocation0]]
  $region57: #{model_forward.1} parent=0
    _
  %s9 = ssub.s32 1, %s7
  %s10 = scalar_select 0, %s9, %s7
  $region1: #{model_forward.1} parent=0
    #allocation2 [shape = 'u8[1024]{0}', space=vmem, size = 0x400, scoped, tag = 'output window, operand 0']
    #allocation3 [shape = 's32[2]{0}', space=sflag, size = 0x8, scoped, tag = 'scoped memory for model_forward.1']
    %11 = vsyncpa [#allocation3], 0
    %s12 = scalar_lea.sflag [#allocation3], 1
    %13 = vsyncpa %s12, 0
    loop: start=0, step=1, limit=4
    $region2: #{model_forward.1} parent=1 // loop_pre_header
      _
    $region3: #{model_forward.1} parent=1 // loop_header
      %s15 = sphi 0, %s19
      %p16 = scmp.ge.s32.totalorder %s15, 4
      %s25 = sphi 0, %s27
      %s28 = sphi 0, %s25
      %s29 = sphi 0, %s28
      %s45 = sphi 0, %s29
      %s49 = sphi 0, %s49
      %s51 = sphi 0, %s49
      %s52 = sphi 0, %s51
      %s66 = sphi 0, %s52
      %s70 = sphi 0, %s70
      %s72 = sphi 0, %s70
      %s73 = sphi 0, %s72
      %s87 = sphi 0, %s73
      %s91 = sphi 0, %s91
      %s93 = sphi 0, %s91
      %s94 = sphi 0, %s93
      %s108 = sphi 0, %s94
      %s112 = sphi 0, %s112
      %s114 = sphi 0, %s112
      %s115 = sphi 0, %s114
      %s129 = sphi 0, %s115
      %s133 = sphi 0, %s133
      %s135 = sphi 0, %s133
      %s136 = sphi 0, %s135
      %s150 = sphi 0, %s136
      %s156 = sphi 0, %s158
      %s159 = sphi 0, %s156
      %s160 = sphi 0, %s159
      %s176 = sphi 0, %s160
    $region4: #{model_forward.1} parent=1 // loop_header_branch
      %18 = sbr.rel (%p16) target = $region8
    $region5: #{model_forward.1} parent=1 // loop_body
      %s20 = ssub.s32 %s15, 1
      %s21 = ssub.s32 %s15, 2
      %s22 = sadd.s32 %s15, 1
      %s23 = ssub.s32 %s15, %s22
      %p24 = scmp.eq.s32.totalorder %s23, 0
      %s26 = sadd.s32 %s25, 1
      %s27 = scalar_select %p24, %s25, %s26
      %p30 = pneg %p24
      %p31 = scmp.eq.s32.totalorder %s15, 1
      %p32 = por %p30, %p31
      %p33 = scmp.ne.s32.totalorder %s25, %s28
      %p34 = scmp.eq.s32.totalorder %s15, 0
      %p35 = por %p33, %p34
      %p36 = scmp.ne.s32.totalorder %s25, %s28
      %p37 = scmp.eq.s32.totalorder %s20, 1
      %p38 = por %p36, %p37
      %p39 = scmp.ne.s32.totalorder %s28, %s29
      %p40 = scmp.eq.s32.totalorder %s20, 0
      %p41 = por %p39, %p40
      %p42 = scmp.ne.s32.totalorder %s28, %s29
      %p43 = scmp.eq.s32.totalorder %s21, 1
      %p44 = por %p42, %p43
      %p46 = scmp.ne.s32.totalorder %s29, %s45
      %p47 = scmp.eq.s32.totalorder %s21, 0
      %p48 = por %p46, %p47
      %s50 = sadd.s32 %s49, 1
      %p53 = scmp.eq.s32.totalorder %s15, 1
      %p54 = scmp.ne.s32.totalorder %s49, %s51
      %p55 = scmp.eq.s32.totalorder %s15, 0
      %p56 = por %p54, %p55
      %p57 = scmp.ne.s32.totalorder %s49, %s51
      %p58 = scmp.eq.s32.totalorder %s20, 1
      %p59 = por %p57, %p58
      %p60 = scmp.ne.s32.totalorder %s51, %s52
      %p61 = scmp.eq.s32.totalorder %s20, 0
      %p62 = por %p60, %p61
      %p63 = scmp.ne.s32.totalorder %s51, %s52
      %p64 = scmp.eq.s32.totalorder %s21, 1
      %p65 = por %p63, %p64
      %p67 = scmp.ne.s32.totalorder %s52, %s66
      %p68 = scmp.eq.s32.totalorder %s21, 0
      %p69 = por %p67, %p68
      %s71 = sadd.s32 %s70, 1
      %p74 = scmp.eq.s32.totalorder %s15, 1
      %p75 = scmp.ne.s32.totalorder %s70, %s72
      %p76 = scmp.eq.s32.totalorder %s15, 0
      %p77 = por %p75, %p76
      %p78 = scmp.ne.s32.totalorder %s70, %s72
      %p79 = scmp.eq.s32.totalorder %s20, 1
      %p80 = por %p78, %p79
      %p81 = scmp.ne.s32.totalorder %s72, %s73
      %p82 = scmp.eq.s32.totalorder %s20, 0
      %p83 = por %p81, %p82
      %p84 = scmp.ne.s32.totalorder %s72, %s73
      %p85 = scmp.eq.s32.totalorder %s21, 1
      %p86 = por %p84, %p85
      %p88 = scmp.ne.s32.totalorder %s73, %s87
      %p89 = scmp.eq.s32.totalorder %s21, 0
      %p90 = por %p88, %p89
      %s92 = sadd.s32 %s91, 1
      %p95 = scmp.eq.s32.totalorder %s15, 1
      %p96 = scmp.ne.s32.totalorder %s91, %s93
      %p97 = scmp.eq.s32.totalorder %s15, 0
      %p98 = por %p96, %p97
      %p99 = scmp.ne.s32.totalorder %s91, %s93
      %p100 = scmp.eq.s32.totalorder %s20, 1
      %p101 = por %p99, %p100
      %p102 = scmp.ne.s32.totalorder %s93, %s94
      %p103 = scmp.eq.s32.totalorder %s20, 0
      %p104 = por %p102, %p103
      %p105 = scmp.ne.s32.totalorder %s93, %s94
      %p106 = scmp.eq.s32.totalorder %s21, 1
      %p107 = por %p105, %p106
      %p109 = scmp.ne.s32.totalorder %s94, %s108
      %p110 = scmp.eq.s32.totalorder %s21, 0
      %p111 = por %p109, %p110
      %s113 = sadd.s32 %s112, 1
      %p116 = scmp.eq.s32.totalorder %s15, 1
      %p117 = scmp.ne.s32.totalorder %s112, %s114
      %p118 = scmp.eq.s32.totalorder %s15, 0
      %p119 = por %p117, %p118
      %p120 = scmp.ne.s32.totalorder %s112, %s114
      %p121 = scmp.eq.s32.totalorder %s20, 1
      %p122 = por %p120, %p121
      %p123 = scmp.ne.s32.totalorder %s114, %s115
      %p124 = scmp.eq.s32.totalorder %s20, 0
      %p125 = por %p123, %p124
      %p126 = scmp.ne.s32.totalorder %s114, %s115
      %p127 = scmp.eq.s32.totalorder %s21, 1
      %p128 = por %p126, %p127
      %p130 = scmp.ne.s32.totalorder %s115, %s129
      %p131 = scmp.eq.s32.totalorder %s21, 0
      %p132 = por %p130, %p131
      %s134 = sadd.s32 %s133, 1
      %p137 = scmp.eq.s32.totalorder %s15, 1
      %p138 = scmp.ne.s32.totalorder %s133, %s135
      %p139 = scmp.eq.s32.totalorder %s15, 0
      %p140 = por %p138, %p139
      %p141 = scmp.ne.s32.totalorder %s133, %s135
      %p142 = scmp.eq.s32.totalorder %s20, 1
      %p143 = por %p141, %p142
      %p144 = scmp.ne.s32.totalorder %s135, %s136
      %p145 = scmp.eq.s32.totalorder %s20, 0
      %p146 = por %p144, %p145
      %p147 = scmp.ne.s32.totalorder %s135, %s136
      %p148 = scmp.eq.s32.totalorder %s21, 1
      %p149 = por %p147, %p148
      %p151 = scmp.ne.s32.totalorder %s136, %s150
      %p152 = scmp.eq.s32.totalorder %s21, 0
      %p153 = por %p151, %p152
      %s154 = ssub.s32 %s15, %s22
      %p155 = scmp.eq.s32.totalorder %s154, 0
      %s157 = sadd.s32 %s156, 1
      %s158 = scalar_select %p155, %s156, %s157
      %p161 = pneg %p155
      %p162 = scmp.eq.s32.totalorder %s15, 1
      %p163 = por %p161, %p162
      %p164 = scmp.ne.s32.totalorder %s156, %s159
      %p165 = scmp.eq.s32.totalorder %s15, 0
      %p166 = por %p164, %p165
      %p167 = scmp.ne.s32.totalorder %s156, %s159
      %p168 = scmp.eq.s32.totalorder %s20, 1
      %p169 = por %p167, %p168
      %p170 = scmp.ne.s32.totalorder %s159, %s160
      %p171 = scmp.eq.s32.totalorder %s20, 0
      %p172 = por %p170, %p171
      %p173 = scmp.ne.s32.totalorder %s159, %s160
      %p174 = scmp.eq.s32.totalorder %s21, 1
      %p175 = por %p173, %p174
      %p177 = scmp.ne.s32.totalorder %s160, %s176
      %p178 = scmp.eq.s32.totalorder %s21, 0
      %p179 = por %p177, %p178
      %p180 = scmp.le.s32.totalorder 1, %s15
      %p181 = scmp.lt.s32.totalorder %s15, 3
      %p182 = pnand %p180, %p181
      %p183 = pneg %p182
      // Predicated region
      $region9: #{model_forward.1} parent=5 // pred_check
        _
      $region10: #{model_forward.1} parent=5 // pred_check_branch
        %185 = sbr.rel (%p182) target = $region12
      $region11: #{model_forward.1} parent=5 // pred_region
        %s186 = ssub.s32 %s15, 1
        // Predicated region
        $region13: #{model_forward.1} parent=11 // pred_check
          %p187 = pneg %p62
        $region14: #{model_forward.1} parent=11 // pred_check_branch
          %189 = sbr.rel (%p187) target = $region16
        $region15: #{model_forward.1} parent=11 // pred_region
          _
        $region16: #{model_forward.1} parent=11 // pred_fallthru
          _
        // Predicated region
        $region17: #{model_forward.1} parent=11 // pred_check
          %p190 = pneg %p83
        $region18: #{model_forward.1} parent=11 // pred_check_branch
          %192 = sbr.rel (%p190) target = $region20
        $region19: #{model_forward.1} parent=11 // pred_region
          _
        $region20: #{model_forward.1} parent=11 // pred_fallthru
          _
        // Predicated region
        $region21: #{model_forward.1} parent=11 // pred_check
          %p193 = pneg %p104
        $region22: #{model_forward.1} parent=11 // pred_check_branch
          %195 = sbr.rel (%p193) target = $region24
        $region23: #{model_forward.1} parent=11 // pred_region
          _
        $region24: #{model_forward.1} parent=11 // pred_fallthru
          _
        // Predicated region
        $region25: #{model_forward.1} parent=11 // pred_check
          %p196 = pneg %p125
        $region26: #{model_forward.1} parent=11 // pred_check_branch
          %198 = sbr.rel (%p196) target = $region28
        $region27: #{model_forward.1} parent=11 // pred_region
          _
        $region28: #{model_forward.1} parent=11 // pred_fallthru
          _
        // Predicated region
        $region29: #{model_forward.1} parent=11 // pred_check
          %p199 = pneg %p146
        $region30: #{model_forward.1} parent=11 // pred_check_branch
          %201 = sbr.rel (%p199) target = $region32
        $region31: #{model_forward.1} parent=11 // pred_region
          _
        $region32: #{model_forward.1} parent=11 // pred_fallthru
          _
      $region12: #{model_forward.1} parent=5 // pred_fallthru
        _
      %p202 = scmp.lt.s32.totalorder %s15, 2
      // Predicated region
      $region33: #{model_forward.1} parent=5 // pred_check
        %p203 = pneg %p202
      $region34: #{model_forward.1} parent=5 // pred_check_branch
        %205 = sbr.rel (%p203) target = $region36
      $region35: #{model_forward.1} parent=5 // pred_region
        // Predicated region
        $region37: #{model_forward.1} parent=35 // pred_check
          %p206 = pneg %p35
        $region38: #{model_forward.1} parent=35 // pred_check_branch
          %208 = sbr.rel (%p206) target = $region40
        $region39: #{model_forward.1} parent=35 // pred_region
          %p209 = scmp.lt.s32.totalorder %s15, 1
          %s210 = scalar_select %p209, %s15, 1
          %s211 = smul.addr %s210, 25
          %s212 = smul.addr %s211, 4
          %s213 = scalar_lea.vmem %s0, %s212
        $region40: #{model_forward.1} parent=35 // pred_fallthru
          _
      $region36: #{model_forward.1} parent=5 // pred_fallthru
        _
      %p214 = scmp.le.s32.totalorder 1, %s15
      %p215 = scmp.lt.s32.totalorder %s15, 3
      %p216 = pnand %p214, %p215
      %p217 = pneg %p216
      // Predicated region
      $region41: #{model_forward.1} parent=5 // pred_check
        _
      $region42: #{model_forward.1} parent=5 // pred_check_branch
        %219 = sbr.rel (%p216) target = $region44
      $region43: #{model_forward.1} parent=5 // pred_region
        %s220 = ssub.s32 %s15, 1
        %p221 = scmp.lt.s32.totalorder %s20, 1
        %s222 = scalar_select %p221, %s20, 1
        %s223 = smul.addr %s222, 25
        %s224 = smul.addr %s223, 4
        %s225 = scalar_lea.vmem %s0, %s224
        %p226 = pneg %p41
        %p227 = pneg %p38
        %p228 = pneg %p62
        %p229 = pneg %p59
        %p230 = pneg %p83
        %p231 = pneg %p80
        %p232 = pneg %p104
        %p233 = pneg %p101
        %p234 = pneg %p125
        %p235 = pneg %p122
        %p236 = pneg %p146
        %p237 = pneg %p143
        %p238 = pneg %p172
        %p239 = pneg %p169
        %s240 = sand.u32 %s159, 1
        %s241 = scalar_lea.sflag [#allocation3], %s240
        %s242 = sand.u32 %s159, 1
        %s243 = scalar_lea.vmem [#allocation2], %s242
        %p244 = scmp.lt.s32.totalorder %s20, 1
        %s245 = scalar_select %p244, %s20, 1
        %s246 = smul.addr %s245, 25
        %s247 = smul.addr %s246, 4
        %s248 = scalar_lea.vmem %s0, %s247
        %v250 = vld [vmem:[%s248] sm:$0xf]
        %v251 = vld [vmem:[%s248 + $0x4] sm:$0xf]
        %v252 = vld [vmem:[%s248 + $0x8] sm:$0xf]
        %v253 = vld [vmem:[%s248 + $0xc] sm:$0xf]
        %v254 = vld [vmem:[%s248 + $0x10] sm:$0xf]
        %v255 = vld [vmem:[%s248 + $0x14] sm:$0xf]
        %v256 = vld [vmem:[%s248 + $0x18] sm:$0xf]
        %v257 = vld [vmem:[%s248 + $0x1c] sm:$0xf]
        %v258 = vld [vmem:[%s248 + $0x20] sm:$0xf]
        %v259 = vld [vmem:[%s248 + $0x24] sm:$0xf]
        %v260 = vld [vmem:[%s248 + $0x28] sm:$0xf]
        %v261 = vld [vmem:[%s248 + $0x2c] sm:$0xf]
        %v262 = vld [vmem:[%s248 + $0x30] sm:$0xf]
        %v263 = vld [vmem:[%s248 + $0x34] sm:$0xf]
        %v264 = vld [vmem:[%s248 + $0x38] sm:$0xf]
        %v265 = vld [vmem:[%s248 + $0x3c] sm:$0xf]
        %v266 = vld [vmem:[%s248 + $0x40] sm:$0xf]
        %v267 = vld [vmem:[%s248 + $0x44] sm:$0xf]
        %v268 = vld [vmem:[%s248 + $0x48] sm:$0xf]
        %v269 = vld [vmem:[%s248 + $0x4c] sm:$0xf]
        %v270 = vld [vmem:[%s248 + $0x50] sm:$0xf]
        %v271 = vld [vmem:[%s248 + $0x54] sm:$0xf]
        %v272 = vld [vmem:[%s248 + $0x58] sm:$0xf]
        %v273 = vld [vmem:[%s248 + $0x5c] sm:$0xf]
        %v274 = vld [vmem:[%s248 + $0x60] sm:$0x3]
        %v275 = vld [vmem:[%s1] sm:$0xf]
        %v276 = vld [vmem:[%s1 + $0x4] sm:$0xf]
        %v277 = vld [vmem:[%s1 + $0x8] sm:$0xf]
        %v278 = vld [vmem:[%s1 + $0xc] sm:$0x3]
        %v279 = vld [vmem:[%s2] sm:$0x1]
        %v281 = vperm.slane %v279, 0
        %v308 = vunpack.c.l.b16 %v250
        %v309 = vunpack.c.l.b16 %v251
        %v310 = vunpack.c.l.b16 %v252
        %v311 = vunpack.c.l.b16 %v253
        %v312 = vunpack.c.l.b16 %v254
        %v313 = vunpack.c.l.b16 %v255
        %v314 = vunpack.c.l.b16 %v256
        %v315 = vunpack.c.l.b16 %v257
        %v316 = vunpack.c.l.b16 %v258
        %v317 = vunpack.c.l.b16 %v259
        %v318 = vunpack.c.l.b16 %v260
        %v319 = vunpack.c.l.b16 %v261
        %v320 = vunpack.c.l.b16 %v262
        %v321 = vunpack.c.l.b16 %v263
        %v322 = vunpack.c.l.b16 %v264
        %v323 = vunpack.c.l.b16 %v265
        %v324 = vunpack.c.l.b16 %v266
        %v325 = vunpack.c.l.b16 %v267
        %v326 = vunpack.c.l.b16 %v268
        %v327 = vunpack.c.l.b16 %v269
        %v328 = vunpack.c.l.b16 %v270
        %v329 = vunpack.c.l.b16 %v271
        %v330 = vunpack.c.l.b16 %v272
        %v331 = vunpack.c.l.b16 %v273
        %v332 = vunpack.c.l.b16 %v274
        %v333 = vpack.c.b16 %v309, %v308
        %v334 = vpack.c.b16 %v311, %v310
        %v335 = vpack.c.b16 %v313, %v312
        %v336 = vpack.c.b16 %v315, %v314
        %v337 = vpack.c.b16 %v317, %v316
        %v338 = vpack.c.b16 %v319, %v318
        %v339 = vpack.c.b16 %v321, %v320
        %v340 = vpack.c.b16 %v323, %v322
        %v341 = vpack.c.b16 %v325, %v324
        %v342 = vpack.c.b16 %v327, %v326
        %v343 = vpack.c.b16 %v329, %v328
        %v344 = vpack.c.b16 %v331, %v330
        %v345 = vpack.c.b16 %v332, %v332
        %v350 = vunpack.c.l.b16 %v275
        %v351 = vunpack.c.l.b16 %v276
        %v352 = vunpack.c.l.b16 %v277
        %v353 = vunpack.c.l.b16 %v278
        %v354 = vpack.c.b16 %v351, %v350
        %v355 = vpack.c.b16 %v353, %v352
        %vm357 = vcmask 220160
        %v359 = vsel %vm357, %v333, 0
        %v362 = vsel %vm357, %v334, 0
        %v365 = vsel %vm357, %v335, 0
        %v368 = vsel %vm357, %v336, 0
        %v371 = vsel %vm357, %v337, 0
        %v374 = vsel %vm357, %v338, 0
        %v377 = vsel %vm357, %v339, 0
        %v380 = vsel %vm357, %v340, 0
        %v383 = vsel %vm357, %v341, 0
        %v386 = vsel %vm357, %v342, 0
        %v389 = vsel %vm357, %v343, 0
        %v392 = vsel %vm357, %v344, 0
        %v395 = vsel %vm357, %v345, 0
        %vm397 = vcmask 1044480
        %vm398 = vcmask 1045504
        %v399 = vsel %vm397, 4294967295, 65535
        %v400 = vsel %vm398, %v399, 0
        %v402 = vand.u32 %v355, %v400
        %404 = vmatpush.bf16.msra.mxu0 0
        %405 = vmatpush.bf16.msra.mxu0 0
        %406 = vmatpush.bf16.msra.mxu0 0
        %407 = vmatpush.bf16.msra.mxu0 0
        %408 = vmatpush.bf16.msra.mxu0 0
        %409 = vmatpush.bf16.msra.mxu0 0
        %410 = vmatpush.bf16.msra.mxu0 %v402
        %411 = vmatpush.bf16.msra.mxu0 %v354
        %412 = vmatmul.bf16.gmra.mxu0 %v359
        %v413 = vpop.f32.mrf.mxu0
        %v414 = vadd.f32 %v281, %v413
        %v415 = vpop.f32.mrf.mxu0
        %v416 = vadd.f32 %v281, %v415
        %417 = vmatmul.bf16.gmra.mxu0 %v362
        %v418 = vpop.f32.mrf.mxu0
        %v419 = vadd.f32 %v281, %v418
        %v420 = vpop.f32.mrf.mxu0
        %v421 = vadd.f32 %v281, %v420
        %422 = vmatmul.bf16.gmra.mxu0 %v365
        %v423 = vpop.f32.mrf.mxu0
        %v424 = vadd.f32 %v281, %v423
        %v425 = vpop.f32.mrf.mxu0
        %v426 = vadd.f32 %v281, %v425
        %427 = vmatmul.bf16.gmra.mxu0 %v368
        %v428 = vpop.f32.mrf.mxu0
        %v429 = vadd.f32 %v281, %v428
        %v430 = vpop.f32.mrf.mxu0
        %v431 = vadd.f32 %v281, %v430
        %432 = vmatmul.bf16.gmra.mxu0 %v371
        %v433 = vpop.f32.mrf.mxu0
        %v434 = vadd.f32 %v281, %v433
        %v435 = vpop.f32.mrf.mxu0
        %v436 = vadd.f32 %v281, %v435
        %437 = vmatmul.bf16.gmra.mxu0 %v374
        %v438 = vpop.f32.mrf.mxu0
        %v439 = vadd.f32 %v281, %v438
        %v440 = vpop.f32.mrf.mxu0
        %v441 = vadd.f32 %v281, %v440
        %442 = vmatmul.bf16.gmra.mxu0 %v377
        %v443 = vpop.f32.mrf.mxu0
        %v444 = vadd.f32 %v281, %v443
        %v445 = vpop.f32.mrf.mxu0
        %v446 = vadd.f32 %v281, %v445
        %447 = vmatmul.bf16.gmra.mxu0 %v380
        %v448 = vpop.f32.mrf.mxu0
        %v449 = vadd.f32 %v281, %v448
        %v450 = vpop.f32.mrf.mxu0
        %v451 = vadd.f32 %v281, %v450
        %452 = vmatmul.bf16.gmra.mxu0 %v383
        %v453 = vpop.f32.mrf.mxu0
        %v454 = vadd.f32 %v281, %v453
        %v455 = vpop.f32.mrf.mxu0
        %v456 = vadd.f32 %v281, %v455
        %457 = vmatmul.bf16.gmra.mxu0 %v386
        %v458 = vpop.f32.mrf.mxu0
        %v459 = vadd.f32 %v281, %v458
        %v460 = vpop.f32.mrf.mxu0
        %v461 = vadd.f32 %v281, %v460
        %462 = vmatmul.bf16.gmra.mxu0 %v389
        %v463 = vpop.f32.mrf.mxu0
        %v464 = vadd.f32 %v281, %v463
        %v465 = vpop.f32.mrf.mxu0
        %v466 = vadd.f32 %v281, %v465
        %467 = vmatmul.bf16.gmra.mxu0 %v392
        %v468 = vpop.f32.mrf.mxu0
        %v469 = vadd.f32 %v281, %v468
        %v470 = vpop.f32.mrf.mxu0
        %v471 = vadd.f32 %v281, %v470
        %472 = vmatmul.bf16.gmra.mxu0 %v395
        %v473 = vpop.f32.mrf.mxu0
        %v474 = vadd.f32 %v281, %v473
        %v475 = vpop.f32.mrf.mxu0
        %476 = vdwg.mxu0
        %v477 = vmax.f32 %v414, 0.0
        %v478 = vmax.f32 %v416, 0.0
        %v479 = vmax.f32 %v419, 0.0
        %v480 = vmax.f32 %v421, 0.0
        %v481 = vmax.f32 %v424, 0.0
        %v482 = vmax.f32 %v426, 0.0
        %v483 = vmax.f32 %v429, 0.0
        %v484 = vmax.f32 %v431, 0.0
        %v485 = vmax.f32 %v434, 0.0
        %v486 = vmax.f32 %v436, 0.0
        %v487 = vmax.f32 %v439, 0.0
        %v488 = vmax.f32 %v441, 0.0
        %v489 = vmax.f32 %v444, 0.0
        %v490 = vmax.f32 %v446, 0.0
        %v491 = vmax.f32 %v449, 0.0
        %v492 = vmax.f32 %v451, 0.0
        %v493 = vmax.f32 %v454, 0.0
        %v494 = vmax.f32 %v456, 0.0
        %v495 = vmax.f32 %v459, 0.0
        %v496 = vmax.f32 %v461, 0.0
        %v497 = vmax.f32 %v464, 0.0
        %v498 = vmax.f32 %v466, 0.0
        %v499 = vmax.f32 %v469, 0.0
        %v500 = vmax.f32 %v471, 0.0
        %v501 = vmax.f32 %v474, 0.0
        %v502 = vld [vmem:[%s3] sm:$0x3]
        %v503 = vpack.c.bf16 %v478, %v477
        %v504 = vpack.c.bf16 %v480, %v479
        %v505 = vpack.c.bf16 %v482, %v481
        %v506 = vpack.c.bf16 %v484, %v483
        %v507 = vpack.c.bf16 %v486, %v485
        %v508 = vpack.c.bf16 %v488, %v487
        %v509 = vpack.c.bf16 %v490, %v489
        %v510 = vpack.c.bf16 %v492, %v491
        %v511 = vpack.c.bf16 %v494, %v493
        %v512 = vpack.c.bf16 %v496, %v495
        %v513 = vpack.c.bf16 %v498, %v497
        %v514 = vpack.c.bf16 %v500, %v499
        %v515 = vpack.c.bf16 %v501, %v501
        %517 = vst [vmem:[#allocation1] ss:$9 sm:$0xff] %v502
        %v518 = vld [vmem:[#allocation1] sm:$0xff]
        %v519 = vld [vmem:[#allocation1 + $0x9] sm:$0xff]
        %vm521 = vcmask 556032
        %v522 = vsel %vm521, %v519, 0
        %vm524 = vcmask 1041408
        %v526 = vsel %vm524, %v515, 0
        %528 = vmatpush.bf16.msra.mxu0 %v510
        %529 = vmatpush.bf16.msra.mxu0 %v509
        %530 = vmatpush.bf16.msra.mxu0 %v508
        %531 = vmatpush.bf16.msra.mxu0 %v507
        %532 = vmatpush.bf16.msra.mxu0 %v506
        %533 = vmatpush.bf16.msra.mxu0 %v505
        %534 = vmatpush.bf16.msra.mxu0 %v504
        %535 = vmatpush.bf16.msra.mxu0 %v503
        %536 = vmatmul.bf16.gmra.mxu0 %v518
        %v537 = vpop.f32.mrf.mxu0
        %v538 = vadd.f32 0.0, %v537
        %v539 = vpop.f32.mrf.mxu0
        %540 = vdwg.mxu0
        %541 = vmatpush.bf16.msra.mxu0 0
        %542 = vmatpush.bf16.msra.mxu0 0
        %543 = vmatpush.bf16.msra.mxu0 0
        %544 = vmatpush.bf16.msra.mxu0 %v526
        %545 = vmatpush.bf16.msra.mxu0 %v514
        %546 = vmatpush.bf16.msra.mxu0 %v513
        %547 = vmatpush.bf16.msra.mxu0 %v512
        %548 = vmatpush.bf16.msra.mxu0 %v511
        %549 = vmatmul.bf16.gmra.mxu0 %v522
        %v550 = vpop.f32.mrf.mxu0
        %v551 = vadd.f32 %v538, %v550
        %v552 = vpop.f32.mrf.mxu0
        %553 = vdwg.mxu0
        %v554 = vld [vmem:[%s4] sm:$0xff]
        %v555 = vld [vmem:[%s4 + $0x8] sm:$0xff]
        %v556 = vld [vmem:[%s4 + $0x10] sm:$0xff]
        %v557 = vld [vmem:[%s4 + $0x18] sm:$0xff]
        %v558 = vld [vmem:[%s4 + $0x20] sm:$0xff]
        %v559 = vld [vmem:[%s4 + $0x28] sm:$0xff]
        %v560 = vld [vmem:[%s4 + $0x30] sm:$0xff]
        %v561 = vld [vmem:[%s4 + $0x38] sm:$0xff]
        %v562 = vld [vmem:[%s5] sm:$0x1]
        %vm563 = vcmask 523264
        %v565 = vsel %vm563, %v551, 0
        %567 = vmatpush.msra.mxu0 0.0
        %568 = vmatpush.msra.mxu0 0.0
        %569 = vmatpush.msra.mxu0 0.0
        %570 = vmatpush.msra.mxu0 0.0
        %571 = vmatpush.msra.mxu0 0.0
        %572 = vmatpush.msra.mxu0 0.0
        %573 = vmatpush.msra.mxu0 0.0
        %574 = vmatpush.msra.mxu0 0.0
        %575 = vmatpush.msra.mxu0 %v561
        %576 = vmatpush.msra.mxu0 %v560
        %577 = vmatpush.msra.mxu0 %v559
        %578 = vmatpush.msra.mxu0 %v558
        %579 = vmatpush.msra.mxu0 %v557
        %580 = vmatpush.msra.mxu0 %v556
        %581 = vmatpush.msra.mxu0 %v555
        %582 = vmatpush.msra.mxu0 %v554
        %583 = vmatmul.f32.gmra.mxu0 %v565
        %v584 = vpop.f32.mrf.mxu0
        %v585 = vadd.f32 %v562, %v584
        %586 = vdwg.mxu0
        %587 = vst [vmem:[%s243] sm:$0x1] %v585
        %s588 = sand.u32 %s159, 1
        %s589 = scalar_lea.sflag [#allocation3], %s588
        %s590 = sand.u32 %s159, 1
        %s591 = scalar_lea.vmem [#allocation2], %s590
        // Predicated region
        $region45: #{model_forward.1} parent=43 // pred_check
          %p592 = pneg %p169
        $region46: #{model_forward.1} parent=43 // pred_check_branch
          %594 = sbr.rel (%p592) target = $region48
        $region47: #{model_forward.1} parent=43 // pred_region
          %596 = vsyncadd %s589, 0
          %s597 = scalar_lea.hbm %s6, %s20
          %s599 = sshll.u32 %s591, 4
          %s600 = int_to_ptr.vmem [resolvable:$true] %s599
          %s601 = sshll.u32 %s597, 4
          %s602 = int_to_ptr.hbm [resolvable:$true] %s601
          %604 = dma.vmem_to_hbm [thread:$0]  %s600, 16, %s602, %s589
        $region48: #{model_forward.1} parent=43 // pred_fallthru
          _
      $region44: #{model_forward.1} parent=5 // pred_fallthru
        _
      %p605 = scmp.le.s32.totalorder 2, %s15
      // Predicated region
      $region49: #{model_forward.1} parent=5 // pred_check
        %p606 = pneg %p605
      $region50: #{model_forward.1} parent=5 // pred_check_branch
        %608 = sbr.rel (%p606) target = $region52
      $region51: #{model_forward.1} parent=5 // pred_region
        %s609 = ssub.s32 %s15, 2
        // Predicated region
        $region53: #{model_forward.1} parent=51 // pred_check
          %p610 = pneg %p175
        $region54: #{model_forward.1} parent=51 // pred_check_branch
          %612 = sbr.rel (%p610) target = $region56
        $region55: #{model_forward.1} parent=51 // pred_region
          %s613 = sand.u32 %s160, 1
          %s614 = scalar_lea.sflag [#allocation3], %s613
          %s615 = sand.u32 %s160, 1
          %s616 = scalar_lea.vmem [#allocation2], %s615
          %618 = dma.done %s614, 16
        $region56: #{model_forward.1} parent=51 // pred_fallthru
          _
      $region52: #{model_forward.1} parent=5 // pred_fallthru
        _
    $region6: #{model_forward.1} parent=1 // loop_footer
      %s19 = sadd.s32 1, %s15
    $region7: #{model_forward.1} parent=1 // loop_footer_branch
      %14 = sbr.rel target = $region3
    $region8: #{model_forward.1} parent=1 // loop_exit
      _
    %619 = vsyncpa [#allocation3], 1
    %s620 = scalar_lea.sflag [#allocation3], 1
    %621 = vsyncpa %s620, 1

</llo_original>
